<compile_context>
chip_gen: v6e
topology: v6e:2x2x1
jax: 0.10.0
libtpu: 0.0.40
codegen_flags: <defaults>
</compile_context>

<pallas_src>
import jax
import jax.numpy as jnp
import numpy as np
from jax.experimental import pallas as pl
from jax.experimental.pallas import tpu as pltpu


# ----------------------------------------------------------------------------- #
# Fused kernel: 3-NN inverse-distance interpolation + (concat-folded) MLP stack  #
# ----------------------------------------------------------------------------- #
def _make_fused_kernel(num_layers):
    def kernel(p1_ref, p2_ref, f1_ref, f2_ref, *rest):
        # Blocks per grid point (b, j):
        #   p1_ref: (1, N1, 3)   known points (row-major, resident across j)
        #   p2_ref: (1, 3, TN2)  query-point tile (native channels-first layout)
        #   f1_ref: (1, C1, N1)  features on points1 (resident across j)
        #   f2_ref: (1, C2, TN2) features on points2 tile
        #   rest  : [W0a (C0,C1), W0b (C0,C2), b0 (C0,1), W1, b1, ...], out_ref
        out_ref = rest[-1]
        params = rest[:-1]

        p1 = p1_ref[0].astype(jnp.float32)          # (N1, 3)
        p2 = p2_ref[0].astype(jnp.float32)          # (3, TN2)
        f1 = f1_ref[0]                              # (C1, N1)
        f2 = f2_ref[0]                              # (C2, TN2)
        n1 = p1.shape[0]

        # d^T[j, i] = |p1_j|^2 + |p2_i|^2 - 2 <p1_j, p2_i>   -> (N1, TN2), lane-dense
        sq1 = jnp.sum(p1 * p1, axis=1, keepdims=True)              # (N1, 1)
        sq2 = jnp.sum(p2 * p2, axis=0, keepdims=True)              # (1, TN2)
        cross = jax.lax.dot_general(                                # MXU, K=3
            p1, p2, (((1,), (0,)), ((), ())),
            preferred_element_type=jnp.float32)                     # (N1, TN2)
        d_t = sq1 + sq2 - 2.0 * cross

        # 3 nearest neighbours per query (column).  All reductions are along
        # sublanes (axis 0).  PyTorch three_nn returns Euclidean distances that
        # the module squares, so inverse-squared-distance weighting (clamped at
        # 1e-10) reproduces `dist*dist; dist[dist<1e-10]=1e-10; 1/dist; norm`.
        row = jax.lax.broadcasted_iota(jnp.int32, d_t.shape, 0)
        masked = d_t
        w_acc = jnp.zeros_like(d_t)
        for _ in range(3):
            mval = jnp.min(masked, axis=0, keepdims=True)           # (1, TN2)
            cand = jnp.where(masked <= mval, row, n1)
            sel = jnp.min(cand, axis=0, keepdims=True)              # first argmin
            onehot = (row == sel)                                   # (N1, TN2)
            inv_d = pl.reciprocal(jnp.maximum(mval, 1e-10), approx=True)
            w_acc = w_acc + onehot.astype(jnp.float32) * inv_d
            masked = jnp.where(onehot, jnp.inf, masked)
        w_sum = jnp.sum(w_acc, axis=0, keepdims=True)               # (1, TN2)
        w_norm = w_acc * pl.reciprocal(w_sum, approx=True)          # (N1, TN2)

        # interpolation as a matmul on the MXU (bf16 operands, f32 accumulation)
        interp = jax.lax.dot_general(
            f1.astype(jnp.bfloat16), w_norm.astype(jnp.bfloat16),
            (((1,), (0,)), ((), ())),
            preferred_element_type=jnp.float32)                     # (C1, TN2)

        # layer 0: concat folded into the split weight -> W0a@interp + W0b@f2
        w0a = params[0][...]                                        # bf16 (C0, C1)
        w0b = params[1][...]                                        # bf16 (C0, C2)
        b0 = params[2][...]                                         # f32  (C0, 1)
        x = (jax.lax.dot_general(w0a, interp.astype(jnp.bfloat16),
                                 (((1,), (0,)), ((), ())),
                                 preferred_element_type=jnp.float32)
             + jax.lax.dot_general(w0b, f2.astype(jnp.bfloat16),
                                   (((1,), (0,)), ((), ())),
                                   preferred_element_type=jnp.float32)
             + b0)
        x = jnp.maximum(x, 0.0)

        # remaining fused Conv1x1(+folded BN)+ReLU layers, activations stay in VMEM
        for li in range(1, num_layers):
            w = params[2 * li + 1][...]                             # bf16 (Cout, Cin)
            b = params[2 * li + 2][...]                             # f32  (Cout, 1)
            x = jax.lax.dot_general(w, x.astype(jnp.bfloat16),
                                    (((1,), (0,)), ((), ())),
                                    preferred_element_type=jnp.float32) + b
            x = jnp.maximum(x, 0.0)

        out_ref[0] = x.astype(out_ref.dtype)
    return kernel


def _pick_tile_n2(n1, n2, budget_bytes=24 << 20):
    """Largest lane-dense N2 tile whose ~6 (N1,TN2) f32 temporaries fit the budget
    (keeps the per-step working set well under v7x's 64 MiB VMEM)."""
    divisible = [t for t in (1024, 512, 256, 128) if n2 % t == 0]
    for t in divisible:
        if 6 * n1 * t * 4 <= budget_bytes:
            return t
    if divisible:
        return divisible[-1]
    return n2  # small / odd N2: single full-width tile


def feature_propagation_forward(points1, points2, features1, features2,
                                params, num_layers, cout_last):
    B, _, N1 = points1.shape
    N2 = points2.shape[2]
    C1 = features1.shape[1]
    C2 = features2.shape[1]

    # only the tiny points1 tensor is transposed; features / points2 stay native
    p1_rm = jnp.transpose(points1, (0, 2, 1))                       # (B, N1, 3)

    tn2 = _pick_tile_n2(N1, N2)
    nt = N2 // tn2

    in_specs = [
        pl.BlockSpec((1, N1, 3), lambda b, j: (b, 0, 0)),           # resident
        pl.BlockSpec((1, 3, tn2), lambda b, j: (b, 0, j)),
        pl.BlockSpec((1, C1, N1), lambda b, j: (b, 0, 0)),          # resident
        pl.BlockSpec((1, C2, tn2), lambda b, j: (b, 0, j)),
    ]
    for p in params:                                                # weights/biases
        in_specs.append(pl.BlockSpec(p.shape, lambda b, j: (0, 0)))

    return pl.pallas_call(
        _make_fused_kernel(num_layers),
        out_shape=jax.ShapeDtypeStruct((B, cout_last, N2), jnp.float32),
        grid_spec=pltpu.PrefetchScalarGridSpec(
            num_scalar_prefetch=0,
            grid=(B, nt),
            in_specs=in_specs,
            out_specs=pl.BlockSpec((1, cout_last, tn2), lambda b, j: (b, 0, j)),
        ),
        compiler_params=pltpu.CompilerParams(
            dimension_semantics=("parallel", "parallel")),
    )(p1_rm, points2, features1, features2, *params)


# ----------------------------------------------------------------------------- #
# Module wrapper with deterministic parameter init (eval-mode BN folded)         #
# ----------------------------------------------------------------------------- #
class FeaturePropagation:
    def __init__(self, in_channels1, in_channels2, out_channels, key):
        chans = [in_channels1 + in_channels2, *out_channels]
        eps = 0.001
        self.num_layers = len(chans) - 1
        self.cout_last = chans[-1]
        self.ref_layers = []        # f32 (W (cout,cin), b (cout,)) for the reference
        self.kernel_params = []     # bf16 weights (layer-0 split at C1) + f32 biases
        for i in range(1, len(chans)):
            cin, cout = chans[i - 1], chans[i]
            key, kw, kb, kg, kbt, km, kv = jax.random.split(key, 7)
            w = jax.random.normal(kw, (cout, cin), jnp.float32) / np.sqrt(cin)
            b = 0.1 * jax.random.normal(kb, (cout,), jnp.float32)
            gamma = 1.0 + 0.1 * jax.random.normal(kg, (cout,), jnp.float32)
            beta = 0.1 * jax.random.normal(kbt, (cout,), jnp.float32)
            r_mean = 0.1 * jax.random.normal(km, (cout,), jnp.float32)
            r_var = jnp.abs(1.0 + 0.1 * jax.random.normal(kv, (cout,), jnp.float32))
            scale = gamma / jnp.sqrt(r_var + eps)
            w_eff = w * scale[:, None]                  # (cout, cin)
            b_eff = (b - r_mean) * scale + beta         # (cout,)
            self.ref_layers.append((w_eff, b_eff))
            if i == 1:
                self.kernel_params += [
                    w_eff[:, :in_channels1].astype(jnp.bfloat16),
                    w_eff[:, in_channels1:].astype(jnp.bfloat16),
                    b_eff[:, None],
                ]
            else:
                self.kernel_params += [w_eff.astype(jnp.bfloat16), b_eff[:, None]]

    def __call__(self, points1, points2, features1, features2):
        # PyTorch layout in: points (B, 3, N), features (B, C, N); out (B, Cout, N2)
        return feature_propagation_forward(
            points1, points2, features1, features2,
            self.kernel_params, self.num_layers, self.cout_last)


# ----------------------------------------------------------------------------- #
# Pure-JAX (f32) reference for verification                                       #
# ----------------------------------------------------------------------------- #
def reference_forward(points1, points2, features1, features2, layers):
    p1 = jnp.transpose(points1, (0, 2, 1))                               # (B,N1,3)
    p2 = jnp.transpose(points2, (0, 2, 1))                               # (B,N2,3)
    d = jnp.sum((p2[:, :, None, :] - p1[:, None, :, :]) ** 2, axis=-1)   # (B,N2,N1)
    neg, idx = jax.lax.top_k(-d, 3)
    dist = jnp.maximum(-neg, 1e-10)
    inv = 1.0 / dist
    w = inv / jnp.sum(inv, axis=-1, keepdims=True)                       # (B,N2,3)
    f1t = jnp.transpose(features1, (0, 2, 1))                            # (B,N1,C1)
    gathered = jax.vmap(lambda f, i: f[i])(f1t, idx)                     # (B,N2,3,C1)
    interp = jnp.sum(gathered * w[..., None], axis=2)                    # (B,N2,C1)
    x = jnp.concatenate([interp, jnp.transpose(features2, (0, 2, 1))], axis=-1)
    for W, b in layers:
        x = jnp.maximum(x @ W.T + b, 0.0)
    return jnp.transpose(x, (0, 2, 1))                                   # (B,Cout,N2)


if __name__ == "__main__":
    key = jax.random.PRNGKey(0)
    B, N1, N2 = 2, 16, 8
    C1, C2 = 4, 4
    out_channels = [32, 16]

    k1, k2, k3, k4, kp = jax.random.split(key, 5)
    points1 = jax.random.normal(k1, (B, 3, N1), jnp.float32)
    points2 = jax.random.normal(k2, (B, 3, N2), jnp.float32)
    features1 = jax.random.normal(k3, (B, C1, N1), jnp.float32)
    features2 = jax.random.normal(k4, (B, C2, N2), jnp.float32)

    fp = FeaturePropagation(C1, C2, out_channels, kp)
    out = jax.block_until_ready(fp(points1, points2, features1, features2))
    assert out.shape == (B, out_channels[-1], N2), out.shape

    ref = reference_forward(points1, points2, features1, features2, fp.ref_layers)
    # bf16 MXU operands (f32 accumulation) + approx reciprocals -> loosened tolerance
    np.testing.assert_allclose(np.asarray(out), np.asarray(ref), rtol=5e-2, atol=5e-2)
    print("KERNEL_OK")
</pallas_src>

<mosaic_0001>
module attributes {stable_mosaic.version = 11 : i64} {
  func.func @kernel(%arg0: i32, %arg1: i32, %arg2: memref<1x16x3xf32, #tpu.memory_space<vmem>>, %arg3: memref<1x3x8xf32, #tpu.memory_space<vmem>>, %arg4: memref<1x4x16xf32, #tpu.memory_space<vmem>>, %arg5: memref<1x4x8xf32, #tpu.memory_space<vmem>>, %arg6: memref<32x4xbf16, #tpu.memory_space<vmem>>, %arg7: memref<32x4xbf16, #tpu.memory_space<vmem>>, %arg8: memref<32x1xf32, #tpu.memory_space<vmem>>, %arg9: memref<16x32xbf16, #tpu.memory_space<vmem>>, %arg10: memref<16x1xf32, #tpu.memory_space<vmem>>, %arg11: memref<1x16x8xf32, #tpu.memory_space<vmem>>) attributes {dimension_semantics = [#tpu.dimension_semantics<parallel>, #tpu.dimension_semantics<parallel>], iteration_bounds = array<i64: 2, 1>, scalar_prefetch = 0 : i64, scratch_operands = 0 : i64, tpu.core_type = #tpu.core_type<tc>, window_params = [{transform_indices = @transform_0, window_bounds = array<i64: 1, 16, 3>}, {transform_indices = @transform_1, window_bounds = array<i64: 1, 3, 8>}, {transform_indices = @transform_2, window_bounds = array<i64: 1, 4, 16>}, {transform_indices = @transform_3, window_bounds = array<i64: 1, 4, 8>}, {pipeline_mode = #tpu.pipeline_mode<synchronous>, transform_indices = @transform_4, window_bounds = array<i64: 32, 4>}, {pipeline_mode = #tpu.pipeline_mode<synchronous>, transform_indices = @transform_5, window_bounds = array<i64: 32, 4>}, {pipeline_mode = #tpu.pipeline_mode<synchronous>, transform_indices = @transform_6, window_bounds = array<i64: 32, 1>}, {pipeline_mode = #tpu.pipeline_mode<synchronous>, transform_indices = @transform_7, window_bounds = array<i64: 16, 32>}, {pipeline_mode = #tpu.pipeline_mode<synchronous>, transform_indices = @transform_8, window_bounds = array<i64: 16, 1>}, {transform_indices = @transform_9, window_bounds = array<i64: 1, 16, 8>}]} {
    %c0 = arith.constant 0 : index
    %c0_0 = arith.constant 0 : index
    %c0_1 = arith.constant 0 : index
    %0 = vector.load %arg2[%c0, %c0_0, %c0_1] : memref<1x16x3xf32, #tpu.memory_space<vmem>>, vector<1x16x3xf32>
    %1 = vector.shape_cast %0 : vector<1x16x3xf32> to vector<16x3xf32>
    %c0_2 = arith.constant 0 : index
    %c0_3 = arith.constant 0 : index
    %c0_4 = arith.constant 0 : index
    %2 = vector.load %arg3[%c0_2, %c0_3, %c0_4] : memref<1x3x8xf32, #tpu.memory_space<vmem>>, vector<1x3x8xf32>
    %3 = vector.shape_cast %2 : vector<1x3x8xf32> to vector<3x8xf32>
    %c0_5 = arith.constant 0 : index
    %c0_6 = arith.constant 0 : index
    %c0_7 = arith.constant 0 : index
    %4 = vector.load %arg4[%c0_5, %c0_6, %c0_7] : memref<1x4x16xf32, #tpu.memory_space<vmem>>, vector<1x4x16xf32>
    %5 = vector.shape_cast %4 : vector<1x4x16xf32> to vector<4x16xf32>
    %c0_8 = arith.constant 0 : index
    %c0_9 = arith.constant 0 : index
    %c0_10 = arith.constant 0 : index
    %6 = vector.load %arg5[%c0_8, %c0_9, %c0_10] : memref<1x4x8xf32, #tpu.memory_space<vmem>>, vector<1x4x8xf32>
    %7 = vector.shape_cast %6 : vector<1x4x8xf32> to vector<4x8xf32>
    %8 = arith.mulf %1, %1 : vector<16x3xf32>
    %cst = arith.constant dense<0.000000e+00> : vector<16xf32>
    %9 = vector.multi_reduction <add>, %8, %cst [1] : vector<16x3xf32> to vector<16xf32>
    %10 = vector.shape_cast %9 : vector<16xf32> to vector<16x1xf32>
    %11 = arith.mulf %3, %3 : vector<3x8xf32>
    %cst_11 = arith.constant dense<0.000000e+00> : vector<8xf32>
    %12 = vector.multi_reduction <add>, %11, %cst_11 [0] : vector<3x8xf32> to vector<8xf32>
    %13 = vector.shape_cast %12 : vector<8xf32> to vector<1x8xf32>
    %cst_12 = arith.constant dense<0.000000e+00> : vector<16x8xf32>
    %14 = tpu.matmul %1, %3, %cst_12 {dimension_numbers = #tpu.dot_dimension_numbers<[1], [0], [0], [1], [0, 0, 1, 1], [], []>} : vector<16x3xf32>, vector<3x8xf32>, vector<16x8xf32> -> vector<16x8xf32>
    %15 = vector.broadcast %10 : vector<16x1xf32> to vector<16x8xf32>
    %16 = vector.broadcast %13 : vector<1x8xf32> to vector<16x8xf32>
    %17 = arith.addf %15, %16 : vector<16x8xf32>
    %cst_13 = arith.constant 2.000000e+00 : f32
    %18 = vector.broadcast %cst_13 : f32 to vector<16x8xf32>
    %19 = arith.mulf %18, %14 : vector<16x8xf32>
    %20 = arith.subf %17, %19 : vector<16x8xf32>
    %21 = tpu.iota {dimensions = array<i32: 0>} : vector<16x8xi32>
    %cst_14 = arith.constant 0.000000e+00 : f32
    %22 = vector.broadcast %cst_14 : f32 to vector<16x8xf32>
    %cst_15 = arith.constant dense<0x7F800000> : vector<8xf32>
    %23 = vector.multi_reduction <minimumf>, %20, %cst_15 [0] : vector<16x8xf32> to vector<8xf32>
    %24 = vector.shape_cast %23 : vector<8xf32> to vector<1x8xf32>
    %25 = vector.broadcast %24 : vector<1x8xf32> to vector<16x8xf32>
    %26 = arith.cmpf ole, %20, %25 : vector<16x8xf32>
    %c16_i32 = arith.constant 16 : i32
    %27 = vector.broadcast %c16_i32 : i32 to vector<16x8xi32>
    %28 = arith.select %26, %21, %27 : vector<16x8xi1>, vector<16x8xi32>
    %cst_16 = arith.constant dense<2147483647> : vector<8xi32>
    %29 = vector.multi_reduction <minsi>, %28, %cst_16 [0] : vector<16x8xi32> to vector<8xi32>
    %30 = vector.shape_cast %29 : vector<8xi32> to vector<1x8xi32>
    %31 = vector.broadcast %30 : vector<1x8xi32> to vector<16x8xi32>
    %32 = arith.cmpi eq, %21, %31 : vector<16x8xi32>
    %cst_17 = arith.constant 1.000000e-10 : f32
    %33 = vector.broadcast %cst_17 : f32 to vector<1x8xf32>
    %34 = arith.maximumf %24, %33 : vector<1x8xf32>
    %35 = tpu.reciprocal %34 {approx = true} : vector<1x8xf32> -> vector<1x8xf32>
    %36 = arith.extui %32 : vector<16x8xi1> to vector<16x8xi32>
    %37 = arith.sitofp %36 : vector<16x8xi32> to vector<16x8xf32>
    %38 = vector.broadcast %35 : vector<1x8xf32> to vector<16x8xf32>
    %39 = arith.mulf %37, %38 : vector<16x8xf32>
    %40 = arith.addf %22, %39 : vector<16x8xf32>
    %cst_18 = arith.constant 0x7F800000 : f32
    %41 = vector.broadcast %cst_18 : f32 to vector<16x8xf32>
    %42 = arith.select %32, %41, %20 : vector<16x8xi1>, vector<16x8xf32>
    %cst_19 = arith.constant dense<0x7F800000> : vector<8xf32>
    %43 = vector.multi_reduction <minimumf>, %42, %cst_19 [0] : vector<16x8xf32> to vector<8xf32>
    %44 = vector.shape_cast %43 : vector<8xf32> to vector<1x8xf32>
    %45 = vector.broadcast %44 : vector<1x8xf32> to vector<16x8xf32>
    %46 = arith.cmpf ole, %42, %45 : vector<16x8xf32>
    %c16_i32_20 = arith.constant 16 : i32
    %47 = vector.broadcast %c16_i32_20 : i32 to vector<16x8xi32>
    %48 = arith.select %46, %21, %47 : vector<16x8xi1>, vector<16x8xi32>
    %cst_21 = arith.constant dense<2147483647> : vector<8xi32>
    %49 = vector.multi_reduction <minsi>, %48, %cst_21 [0] : vector<16x8xi32> to vector<8xi32>
    %50 = vector.shape_cast %49 : vector<8xi32> to vector<1x8xi32>
    %51 = vector.broadcast %50 : vector<1x8xi32> to vector<16x8xi32>
    %52 = arith.cmpi eq, %21, %51 : vector<16x8xi32>
    %cst_22 = arith.constant 1.000000e-10 : f32
    %53 = vector.broadcast %cst_22 : f32 to vector<1x8xf32>
    %54 = arith.maximumf %44, %53 : vector<1x8xf32>
    %55 = tpu.reciprocal %54 {approx = true} : vector<1x8xf32> -> vector<1x8xf32>
    %56 = arith.extui %52 : vector<16x8xi1> to vector<16x8xi32>
    %57 = arith.sitofp %56 : vector<16x8xi32> to vector<16x8xf32>
    %58 = vector.broadcast %55 : vector<1x8xf32> to vector<16x8xf32>
    %59 = arith.mulf %57, %58 : vector<16x8xf32>
    %60 = arith.addf %40, %59 : vector<16x8xf32>
    %cst_23 = arith.constant 0x7F800000 : f32
    %61 = vector.broadcast %cst_23 : f32 to vector<16x8xf32>
    %62 = arith.select %52, %61, %42 : vector<16x8xi1>, vector<16x8xf32>
    %cst_24 = arith.constant dense<0x7F800000> : vector<8xf32>
    %63 = vector.multi_reduction <minimumf>, %62, %cst_24 [0] : vector<16x8xf32> to vector<8xf32>
    %64 = vector.shape_cast %63 : vector<8xf32> to vector<1x8xf32>
    %65 = vector.broadcast %64 : vector<1x8xf32> to vector<16x8xf32>
    %66 = arith.cmpf ole, %62, %65 : vector<16x8xf32>
    %c16_i32_25 = arith.constant 16 : i32
    %67 = vector.broadcast %c16_i32_25 : i32 to vector<16x8xi32>
    %68 = arith.select %66, %21, %67 : vector<16x8xi1>, vector<16x8xi32>
    %cst_26 = arith.constant dense<2147483647> : vector<8xi32>
    %69 = vector.multi_reduction <minsi>, %68, %cst_26 [0] : vector<16x8xi32> to vector<8xi32>
    %70 = vector.shape_cast %69 : vector<8xi32> to vector<1x8xi32>
    %71 = vector.broadcast %70 : vector<1x8xi32> to vector<16x8xi32>
    %72 = arith.cmpi eq, %21, %71 : vector<16x8xi32>
    %cst_27 = arith.constant 1.000000e-10 : f32
    %73 = vector.broadcast %cst_27 : f32 to vector<1x8xf32>
    %74 = arith.maximumf %64, %73 : vector<1x8xf32>
    %75 = tpu.reciprocal %74 {approx = true} : vector<1x8xf32> -> vector<1x8xf32>
    %76 = arith.extui %72 : vector<16x8xi1> to vector<16x8xi32>
    %77 = arith.sitofp %76 : vector<16x8xi32> to vector<16x8xf32>
    %78 = vector.broadcast %75 : vector<1x8xf32> to vector<16x8xf32>
    %79 = arith.mulf %77, %78 : vector<16x8xf32>
    %80 = arith.addf %60, %79 : vector<16x8xf32>
    %cst_28 = arith.constant dense<0.000000e+00> : vector<8xf32>
    %81 = vector.multi_reduction <add>, %80, %cst_28 [0] : vector<16x8xf32> to vector<8xf32>
    %82 = vector.shape_cast %81 : vector<8xf32> to vector<1x8xf32>
    %83 = tpu.reciprocal %82 {approx = true} : vector<1x8xf32> -> vector<1x8xf32>
    %84 = vector.broadcast %83 : vector<1x8xf32> to vector<16x8xf32>
    %85 = arith.mulf %80, %84 : vector<16x8xf32>
    %86 = arith.truncf %5 : vector<4x16xf32> to vector<4x16xbf16>
    %87 = arith.truncf %85 : vector<16x8xf32> to vector<16x8xbf16>
    %cst_29 = arith.constant dense<0.000000e+00> : vector<4x8xf32>
    %88 = tpu.matmul %86, %87, %cst_29 {dimension_numbers = #tpu.dot_dimension_numbers<[1], [0], [0], [1], [0, 0, 1, 1], [], []>} : vector<4x16xbf16>, vector<16x8xbf16>, vector<4x8xf32> -> vector<4x8xf32>
    %c0_30 = arith.constant 0 : index
    %c0_31 = arith.constant 0 : index
    %89 = vector.load %arg6[%c0_30, %c0_31] : memref<32x4xbf16, #tpu.memory_space<vmem>>, vector<32x4xbf16>
    %c0_32 = arith.constant 0 : index
    %c0_33 = arith.constant 0 : index
    %90 = vector.load %arg7[%c0_32, %c0_33] : memref<32x4xbf16, #tpu.memory_space<vmem>>, vector<32x4xbf16>
    %c0_34 = arith.constant 0 : index
    %c0_35 = arith.constant 0 : index
    %91 = vector.load %arg8[%c0_34, %c0_35] : memref<32x1xf32, #tpu.memory_space<vmem>>, vector<32x1xf32>
    %92 = arith.truncf %88 : vector<4x8xf32> to vector<4x8xbf16>
    %cst_36 = arith.constant dense<0.000000e+00> : vector<32x8xf32>
    %93 = tpu.matmul %89, %92, %cst_36 {dimension_numbers = #tpu.dot_dimension_numbers<[1], [0], [0], [1], [0, 0, 1, 1], [], []>} : vector<32x4xbf16>, vector<4x8xbf16>, vector<32x8xf32> -> vector<32x8xf32>
    %94 = arith.truncf %7 : vector<4x8xf32> to vector<4x8xbf16>
    %cst_37 = arith.constant dense<0.000000e+00> : vector<32x8xf32>
    %95 = tpu.matmul %90, %94, %cst_37 {dimension_numbers = #tpu.dot_dimension_numbers<[1], [0], [0], [1], [0, 0, 1, 1], [], []>} : vector<32x4xbf16>, vector<4x8xbf16>, vector<32x8xf32> -> vector<32x8xf32>
    %96 = arith.addf %93, %95 : vector<32x8xf32>
    %97 = vector.broadcast %91 : vector<32x1xf32> to vector<32x8xf32>
    %98 = arith.addf %96, %97 : vector<32x8xf32>
    %cst_38 = arith.constant 0.000000e+00 : f32
    %99 = vector.broadcast %cst_38 : f32 to vector<32x8xf32>
    %100 = arith.maximumf %98, %99 : vector<32x8xf32>
    %c0_39 = arith.constant 0 : index
    %c0_40 = arith.constant 0 : index
    %101 = vector.load %arg9[%c0_39, %c0_40] : memref<16x32xbf16, #tpu.memory_space<vmem>>, vector<16x32xbf16>
    %c0_41 = arith.constant 0 : index
    %c0_42 = arith.constant 0 : index
    %102 = vector.load %arg10[%c0_41, %c0_42] : memref<16x1xf32, #tpu.memory_space<vmem>>, vector<16x1xf32>
    %103 = arith.truncf %100 : vector<32x8xf32> to vector<32x8xbf16>
    %cst_43 = arith.constant dense<0.000000e+00> : vector<16x8xf32>
    %104 = tpu.matmul %101, %103, %cst_43 {dimension_numbers = #tpu.dot_dimension_numbers<[1], [0], [0], [1], [0, 0, 1, 1], [], []>} : vector<16x32xbf16>, vector<32x8xbf16>, vector<16x8xf32> -> vector<16x8xf32>
    %105 = vector.broadcast %102 : vector<16x1xf32> to vector<16x8xf32>
    %106 = arith.addf %104, %105 : vector<16x8xf32>
    %cst_44 = arith.constant 0.000000e+00 : f32
    %107 = vector.broadcast %cst_44 : f32 to vector<16x8xf32>
    %108 = arith.maximumf %106, %107 : vector<16x8xf32>
    %c0_45 = arith.constant 0 : index
    %c0_46 = arith.constant 0 : index
    %c0_47 = arith.constant 0 : index
    %109 = vector.load %arg11[%c0_45, %c0_46, %c0_47] : memref<1x16x8xf32, #tpu.memory_space<vmem>>, vector<1x16x8xf32>
    %110 = vector.shape_cast %109 : vector<1x16x8xf32> to vector<16x8xf32>
    %111 = vector.shape_cast %108 : vector<16x8xf32> to vector<1x16x8xf32>
    tpu.vector_store %arg11[%c0_45, %c0_46, %c0_47], %111 {strides = array<i32>} : memref<1x16x8xf32, #tpu.memory_space<vmem>>, vector<1x16x8xf32>,
    return
  }
  func.func @transform_0(%arg0: i32, %arg1: i32) -> (i32, i32, i32) {
    %c0_i32 = arith.constant 0 : i32
    %c0_i32_0 = arith.constant 0 : i32
    %c0_i32_1 = arith.constant 0 : i32
    return %arg0, %c0_i32, %c0_i32_0 : i32, i32, i32
  }
  func.func @transform_1(%arg0: i32, %arg1: i32) -> (i32, i32, i32) {
    %c0_i32 = arith.constant 0 : i32
    %c0_i32_0 = arith.constant 0 : i32
    return %arg0, %c0_i32, %arg1 : i32, i32, i32
  }
  func.func @transform_2(%arg0: i32, %arg1: i32) -> (i32, i32, i32) {
    %c0_i32 = arith.constant 0 : i32
    %c0_i32_0 = arith.constant 0 : i32
    %c0_i32_1 = arith.constant 0 : i32
    return %arg0, %c0_i32, %c0_i32_0 : i32, i32, i32
  }
  func.func @transform_3(%arg0: i32, %arg1: i32) -> (i32, i32, i32) {
    %c0_i32 = arith.constant 0 : i32
    %c0_i32_0 = arith.constant 0 : i32
    return %arg0, %c0_i32, %arg1 : i32, i32, i32
  }
  func.func @transform_4(%arg0: i32, %arg1: i32) -> (i32, i32) {
    %c0_i32 = arith.constant 0 : i32
    %c0_i32_0 = arith.constant 0 : i32
    %c0_i32_1 = arith.constant 0 : i32
    return %c0_i32, %c0_i32_0 : i32, i32
  }
  func.func @transform_5(%arg0: i32, %arg1: i32) -> (i32, i32) {
    %c0_i32 = arith.constant 0 : i32
    %c0_i32_0 = arith.constant 0 : i32
    %c0_i32_1 = arith.constant 0 : i32
    return %c0_i32, %c0_i32_0 : i32, i32
  }
  func.func @transform_6(%arg0: i32, %arg1: i32) -> (i32, i32) {
    %c0_i32 = arith.constant 0 : i32
    %c0_i32_0 = arith.constant 0 : i32
    %c0_i32_1 = arith.constant 0 : i32
    return %c0_i32, %c0_i32_0 : i32, i32
  }
  func.func @transform_7(%arg0: i32, %arg1: i32) -> (i32, i32) {
    %c0_i32 = arith.constant 0 : i32
    %c0_i32_0 = arith.constant 0 : i32
    %c0_i32_1 = arith.constant 0 : i32
    return %c0_i32, %c0_i32_0 : i32, i32
  }
  func.func @transform_8(%arg0: i32, %arg1: i32) -> (i32, i32) {
    %c0_i32 = arith.constant 0 : i32
    %c0_i32_0 = arith.constant 0 : i32
    %c0_i32_1 = arith.constant 0 : i32
    return %c0_i32, %c0_i32_0 : i32, i32
  }
  func.func @transform_9(%arg0: i32, %arg1: i32) -> (i32, i32, i32) {
    %c0_i32 = arith.constant 0 : i32
    %c0_i32_0 = arith.constant 0 : i32
    return %arg0, %c0_i32, %arg1 : i32, i32, i32
  }
}

</mosaic_0001>

<llo_original>
// kernel: tpu_custom_call.1
$region0: #{tpu_custom_call.1}
  #allocation0 [shape = 'u32[]', space=smem, size = 0x4, offset = 0x4, fixed_abs, tag = 'smem constant byte address 0x4 - core index']
  #allocation1 [shape = 'u32[144,128]{1,0:T(1,128)}', space=vmem, size = 0x12000, scoped, tag = 'internal scratch']
  %s0 = inlined_call_operand.vmem [shape: f32[2,16,3], index: 0, kind: input, shape index: {}]
  %s1 = inlined_call_operand.vmem [shape: f32[2,3,8], index: 1, kind: input, shape index: {}]
  %s2 = inlined_call_operand.vmem [shape: f32[2,4,16], index: 2, kind: input, shape index: {}]
  %s3 = inlined_call_operand.vmem [shape: f32[2,4,8], index: 3, kind: input, shape index: {}]
  %s4 = inlined_call_operand.vmem [shape: bf16[32,4], index: 4, kind: input, shape index: {}]
  %s5 = inlined_call_operand.vmem [shape: bf16[32,4], index: 5, kind: input, shape index: {}]
  %s6 = inlined_call_operand.vmem [shape: f32[32,1], index: 6, kind: input, shape index: {}]
  %s7 = inlined_call_operand.vmem [shape: bf16[16,32], index: 7, kind: input, shape index: {}]
  %s8 = inlined_call_operand.vmem [shape: f32[16,1], index: 8, kind: input, shape index: {}]
  %s9 = inlined_call_operand.vmem [shape: f32[2,16,8], index: 9, kind: output, shape index: {}]
  %s10 = sld [smem:[#allocation0]]
  $region69: #{tpu_custom_call.1} parent=0
    _
  %s12 = ssub.s32 1, %s10
  %s13 = scalar_select 0, %s12, %s10
  loop: start=0, step=1, limit=4
  $region2: #{tpu_custom_call.1} parent=0 // loop_pre_header
    _
  $region3: #{tpu_custom_call.1} parent=0 // loop_header
    %s15 = sphi 0, %s19
    %p16 = scmp.ge.s32.totalorder %s15, 4
    %s22 = sphi 0, %s34
    %s23 = sphi 0, %s30
    %s24 = sphi 0, %s22
    %s25 = sphi 0, %s23
    %s26 = sphi 0, %s24
    %s27 = sphi 0, %s25
    %s37 = sphi 0, %s39
    %s40 = sphi 0, %s37
    %s41 = sphi 0, %s40
    %s57 = sphi 0, %s41
    %s65 = sphi 0, %s67
    %s68 = sphi 0, %s65
    %s69 = sphi 0, %s68
    %s85 = sphi 0, %s69
    %s91 = sphi 0, %s93
    %s94 = sphi 0, %s91
    %s95 = sphi 0, %s94
    %s111 = sphi 0, %s95
    %s119 = sphi 0, %s121
    %s122 = sphi 0, %s119
    %s123 = sphi 0, %s122
    %s139 = sphi 0, %s123
    %s143 = sphi 0, %s143
    %s145 = sphi 0, %s143
    %s146 = sphi 0, %s145
    %s160 = sphi 0, %s146
    %s164 = sphi 0, %s164
    %s166 = sphi 0, %s164
    %s167 = sphi 0, %s166
    %s181 = sphi 0, %s167
    %s185 = sphi 0, %s185
    %s187 = sphi 0, %s185
    %s188 = sphi 0, %s187
    %s202 = sphi 0, %s188
    %s206 = sphi 0, %s206
    %s208 = sphi 0, %s206
    %s209 = sphi 0, %s208
    %s223 = sphi 0, %s209
    %s227 = sphi 0, %s227
    %s229 = sphi 0, %s227
    %s230 = sphi 0, %s229
    %s244 = sphi 0, %s230
    %s252 = sphi 0, %s254
    %s255 = sphi 0, %s252
    %s256 = sphi 0, %s255
    %s272 = sphi 0, %s256
  $region4: #{tpu_custom_call.1} parent=0 // loop_header_branch
    %18 = sbr.rel (%p16) target = $region8
  $region5: #{tpu_custom_call.1} parent=0 // loop_body
    %s20 = ssub.s32 %s15, 1
    %s21 = ssub.s32 %s15, 2
    %s28 = sadd.s32 1, %s23
    %p29 = scmp.ge.s32.totalorder %s28, 1
    %s30 = scalar_select %p29, 0, %s28
    %s31 = sadd.s32 1, %s22
    %s32 = scalar_select %p29, %s31, %s22
    %p33 = scmp.ge.s32.totalorder %s32, 2
    %s34 = scalar_select %p33, 0, %s32
    %s35 = ssub.s32 %s22, %s34
    %p36 = scmp.eq.s32.totalorder %s35, 0
    %s38 = sadd.s32 %s37, 1
    %s39 = scalar_select %p36, %s37, %s38
    %p42 = pneg %p36
    %p43 = scmp.eq.s32.totalorder %s15, 1
    %p44 = por %p42, %p43
    %p45 = scmp.ne.s32.totalorder %s37, %s40
    %p46 = scmp.eq.s32.totalorder %s15, 0
    %p47 = por %p45, %p46
    %p48 = scmp.ne.s32.totalorder %s37, %s40
    %p49 = scmp.eq.s32.totalorder %s20, 1
    %p50 = por %p48, %p49
    %p51 = scmp.ne.s32.totalorder %s40, %s41
    %p52 = scmp.eq.s32.totalorder %s20, 0
    %p53 = por %p51, %p52
    %p54 = scmp.ne.s32.totalorder %s40, %s41
    %p55 = scmp.eq.s32.totalorder %s21, 1
    %p56 = por %p54, %p55
    %p58 = scmp.ne.s32.totalorder %s41, %s57
    %p59 = scmp.eq.s32.totalorder %s21, 0
    %p60 = por %p58, %p59
    %s61 = ssub.s32 %s22, %s34
    %s62 = ssub.s32 %s23, %s30
    %s63 = sor.u32 %s61, %s62
    %p64 = scmp.eq.s32.totalorder %s63, 0
    %s66 = sadd.s32 %s65, 1
    %s67 = scalar_select %p64, %s65, %s66
    %p70 = pneg %p64
    %p71 = scmp.eq.s32.totalorder %s15, 1
    %p72 = por %p70, %p71
    %p73 = scmp.ne.s32.totalorder %s65, %s68
    %p74 = scmp.eq.s32.totalorder %s15, 0
    %p75 = por %p73, %p74
    %p76 = scmp.ne.s32.totalorder %s65, %s68
    %p77 = scmp.eq.s32.totalorder %s20, 1
    %p78 = por %p76, %p77
    %p79 = scmp.ne.s32.totalorder %s68, %s69
    %p80 = scmp.eq.s32.totalorder %s20, 0
    %p81 = por %p79, %p80
    %p82 = scmp.ne.s32.totalorder %s68, %s69
    %p83 = scmp.eq.s32.totalorder %s21, 1
    %p84 = por %p82, %p83
    %p86 = scmp.ne.s32.totalorder %s69, %s85
    %p87 = scmp.eq.s32.totalorder %s21, 0
    %p88 = por %p86, %p87
    %s89 = ssub.s32 %s22, %s34
    %p90 = scmp.eq.s32.totalorder %s89, 0
    %s92 = sadd.s32 %s91, 1
    %s93 = scalar_select %p90, %s91, %s92
    %p96 = pneg %p90
    %p97 = scmp.eq.s32.totalorder %s15, 1
    %p98 = por %p96, %p97
    %p99 = scmp.ne.s32.totalorder %s91, %s94
    %p100 = scmp.eq.s32.totalorder %s15, 0
    %p101 = por %p99, %p100
    %p102 = scmp.ne.s32.totalorder %s91, %s94
    %p103 = scmp.eq.s32.totalorder %s20, 1
    %p104 = por %p102, %p103
    %p105 = scmp.ne.s32.totalorder %s94, %s95
    %p106 = scmp.eq.s32.totalorder %s20, 0
    %p107 = por %p105, %p106
    %p108 = scmp.ne.s32.totalorder %s94, %s95
    %p109 = scmp.eq.s32.totalorder %s21, 1
    %p110 = por %p108, %p109
    %p112 = scmp.ne.s32.totalorder %s95, %s111
    %p113 = scmp.eq.s32.totalorder %s21, 0
    %p114 = por %p112, %p113
    %s115 = ssub.s32 %s22, %s34
    %s116 = ssub.s32 %s23, %s30
    %s117 = sor.u32 %s115, %s116
    %p118 = scmp.eq.s32.totalorder %s117, 0
    %s120 = sadd.s32 %s119, 1
    %s121 = scalar_select %p118, %s119, %s120
    %p124 = pneg %p118
    %p125 = scmp.eq.s32.totalorder %s15, 1
    %p126 = por %p124, %p125
    %p127 = scmp.ne.s32.totalorder %s119, %s122
    %p128 = scmp.eq.s32.totalorder %s15, 0
    %p129 = por %p127, %p128
    %p130 = scmp.ne.s32.totalorder %s119, %s122
    %p131 = scmp.eq.s32.totalorder %s20, 1
    %p132 = por %p130, %p131
    %p133 = scmp.ne.s32.totalorder %s122, %s123
    %p134 = scmp.eq.s32.totalorder %s20, 0
    %p135 = por %p133, %p134
    %p136 = scmp.ne.s32.totalorder %s122, %s123
    %p137 = scmp.eq.s32.totalorder %s21, 1
    %p138 = por %p136, %p137
    %p140 = scmp.ne.s32.totalorder %s123, %s139
    %p141 = scmp.eq.s32.totalorder %s21, 0
    %p142 = por %p140, %p141
    %s144 = sadd.s32 %s143, 1
    %p147 = scmp.eq.s32.totalorder %s15, 1
    %p148 = scmp.ne.s32.totalorder %s143, %s145
    %p149 = scmp.eq.s32.totalorder %s15, 0
    %p150 = por %p148, %p149
    %p151 = scmp.ne.s32.totalorder %s143, %s145
    %p152 = scmp.eq.s32.totalorder %s20, 1
    %p153 = por %p151, %p152
    %p154 = scmp.ne.s32.totalorder %s145, %s146
    %p155 = scmp.eq.s32.totalorder %s20, 0
    %p156 = por %p154, %p155
    %p157 = scmp.ne.s32.totalorder %s145, %s146
    %p158 = scmp.eq.s32.totalorder %s21, 1
    %p159 = por %p157, %p158
    %p161 = scmp.ne.s32.totalorder %s146, %s160
    %p162 = scmp.eq.s32.totalorder %s21, 0
    %p163 = por %p161, %p162
    %s165 = sadd.s32 %s164, 1
    %p168 = scmp.eq.s32.totalorder %s15, 1
    %p169 = scmp.ne.s32.totalorder %s164, %s166
    %p170 = scmp.eq.s32.totalorder %s15, 0
    %p171 = por %p169, %p170
    %p172 = scmp.ne.s32.totalorder %s164, %s166
    %p173 = scmp.eq.s32.totalorder %s20, 1
    %p174 = por %p172, %p173
    %p175 = scmp.ne.s32.totalorder %s166, %s167
    %p176 = scmp.eq.s32.totalorder %s20, 0
    %p177 = por %p175, %p176
    %p178 = scmp.ne.s32.totalorder %s166, %s167
    %p179 = scmp.eq.s32.totalorder %s21, 1
    %p180 = por %p178, %p179
    %p182 = scmp.ne.s32.totalorder %s167, %s181
    %p183 = scmp.eq.s32.totalorder %s21, 0
    %p184 = por %p182, %p183
    %s186 = sadd.s32 %s185, 1
    %p189 = scmp.eq.s32.totalorder %s15, 1
    %p190 = scmp.ne.s32.totalorder %s185, %s187
    %p191 = scmp.eq.s32.totalorder %s15, 0
    %p192 = por %p190, %p191
    %p193 = scmp.ne.s32.totalorder %s185, %s187
    %p194 = scmp.eq.s32.totalorder %s20, 1
    %p195 = por %p193, %p194
    %p196 = scmp.ne.s32.totalorder %s187, %s188
    %p197 = scmp.eq.s32.totalorder %s20, 0
    %p198 = por %p196, %p197
    %p199 = scmp.ne.s32.totalorder %s187, %s188
    %p200 = scmp.eq.s32.totalorder %s21, 1
    %p201 = por %p199, %p200
    %p203 = scmp.ne.s32.totalorder %s188, %s202
    %p204 = scmp.eq.s32.totalorder %s21, 0
    %p205 = por %p203, %p204
    %s207 = sadd.s32 %s206, 1
    %p210 = scmp.eq.s32.totalorder %s15, 1
    %p211 = scmp.ne.s32.totalorder %s206, %s208
    %p212 = scmp.eq.s32.totalorder %s15, 0
    %p213 = por %p211, %p212
    %p214 = scmp.ne.s32.totalorder %s206, %s208
    %p215 = scmp.eq.s32.totalorder %s20, 1
    %p216 = por %p214, %p215
    %p217 = scmp.ne.s32.totalorder %s208, %s209
    %p218 = scmp.eq.s32.totalorder %s20, 0
    %p219 = por %p217, %p218
    %p220 = scmp.ne.s32.totalorder %s208, %s209
    %p221 = scmp.eq.s32.totalorder %s21, 1
    %p222 = por %p220, %p221
    %p224 = scmp.ne.s32.totalorder %s209, %s223
    %p225 = scmp.eq.s32.totalorder %s21, 0
    %p226 = por %p224, %p225
    %s228 = sadd.s32 %s227, 1
    %p231 = scmp.eq.s32.totalorder %s15, 1
    %p232 = scmp.ne.s32.totalorder %s227, %s229
    %p233 = scmp.eq.s32.totalorder %s15, 0
    %p234 = por %p232, %p233
    %p235 = scmp.ne.s32.totalorder %s227, %s229
    %p236 = scmp.eq.s32.totalorder %s20, 1
    %p237 = por %p235, %p236
    %p238 = scmp.ne.s32.totalorder %s229, %s230
    %p239 = scmp.eq.s32.totalorder %s20, 0
    %p240 = por %p238, %p239
    %p241 = scmp.ne.s32.totalorder %s229, %s230
    %p242 = scmp.eq.s32.totalorder %s21, 1
    %p243 = por %p241, %p242
    %p245 = scmp.ne.s32.totalorder %s230, %s244
    %p246 = scmp.eq.s32.totalorder %s21, 0
    %p247 = por %p245, %p246
    %s248 = ssub.s32 %s22, %s34
    %s249 = ssub.s32 %s23, %s30
    %s250 = sor.u32 %s248, %s249
    %p251 = scmp.eq.s32.totalorder %s250, 0
    %s253 = sadd.s32 %s252, 1
    %s254 = scalar_select %p251, %s252, %s253
    %p257 = pneg %p251
    %p258 = scmp.eq.s32.totalorder %s15, 1
    %p259 = por %p257, %p258
    %p260 = scmp.ne.s32.totalorder %s252, %s255
    %p261 = scmp.eq.s32.totalorder %s15, 0
    %p262 = por %p260, %p261
    %p263 = scmp.ne.s32.totalorder %s252, %s255
    %p264 = scmp.eq.s32.totalorder %s20, 1
    %p265 = por %p263, %p264
    %p266 = scmp.ne.s32.totalorder %s255, %s256
    %p267 = scmp.eq.s32.totalorder %s20, 0
    %p268 = por %p266, %p267
    %p269 = scmp.ne.s32.totalorder %s255, %s256
    %p270 = scmp.eq.s32.totalorder %s21, 1
    %p271 = por %p269, %p270
    %p273 = scmp.ne.s32.totalorder %s256, %s272
    %p274 = scmp.eq.s32.totalorder %s21, 0
    %p275 = por %p273, %p274
    %p276 = scmp.le.s32.totalorder 1, %s15
    %p277 = scmp.lt.s32.totalorder %s15, 3
    %p278 = pnand %p276, %p277
    %p279 = pneg %p278
    // Predicated region
    $region9: #{tpu_custom_call.1} parent=5 // pred_check
      _
    $region10: #{tpu_custom_call.1} parent=5 // pred_check_branch
      %281 = sbr.rel (%p278) target = $region12
    $region11: #{tpu_custom_call.1} parent=5 // pred_region
      %s282 = ssub.s32 %s15, 1
      // Predicated region
      $region13: #{tpu_custom_call.1} parent=11 // pred_check
        %p283 = pneg %p156
      $region14: #{tpu_custom_call.1} parent=11 // pred_check_branch
        %285 = sbr.rel (%p283) target = $region16
      $region15: #{tpu_custom_call.1} parent=11 // pred_region
        _
      $region16: #{tpu_custom_call.1} parent=11 // pred_fallthru
        _
      // Predicated region
      $region17: #{tpu_custom_call.1} parent=11 // pred_check
        %p286 = pneg %p177
      $region18: #{tpu_custom_call.1} parent=11 // pred_check_branch
        %288 = sbr.rel (%p286) target = $region20
      $region19: #{tpu_custom_call.1} parent=11 // pred_region
        _
      $region20: #{tpu_custom_call.1} parent=11 // pred_fallthru
        _
      // Predicated region
      $region21: #{tpu_custom_call.1} parent=11 // pred_check
        %p289 = pneg %p198
      $region22: #{tpu_custom_call.1} parent=11 // pred_check_branch
        %291 = sbr.rel (%p289) target = $region24
      $region23: #{tpu_custom_call.1} parent=11 // pred_region
        _
      $region24: #{tpu_custom_call.1} parent=11 // pred_fallthru
        _
      // Predicated region
      $region25: #{tpu_custom_call.1} parent=11 // pred_check
        %p292 = pneg %p219
      $region26: #{tpu_custom_call.1} parent=11 // pred_check_branch
        %294 = sbr.rel (%p292) target = $region28
      $region27: #{tpu_custom_call.1} parent=11 // pred_region
        _
      $region28: #{tpu_custom_call.1} parent=11 // pred_fallthru
        _
      // Predicated region
      $region29: #{tpu_custom_call.1} parent=11 // pred_check
        %p295 = pneg %p240
      $region30: #{tpu_custom_call.1} parent=11 // pred_check_branch
        %297 = sbr.rel (%p295) target = $region32
      $region31: #{tpu_custom_call.1} parent=11 // pred_region
        _
      $region32: #{tpu_custom_call.1} parent=11 // pred_fallthru
        _
    $region12: #{tpu_custom_call.1} parent=5 // pred_fallthru
      _
    %p298 = scmp.lt.s32.totalorder %s15, 2
    // Predicated region
    $region33: #{tpu_custom_call.1} parent=5 // pred_check
      %p299 = pneg %p298
    $region34: #{tpu_custom_call.1} parent=5 // pred_check_branch
      %301 = sbr.rel (%p299) target = $region36
    $region35: #{tpu_custom_call.1} parent=5 // pred_region
      // Predicated region
      $region37: #{tpu_custom_call.1} parent=35 // pred_check
        %p302 = pneg %p47
      $region38: #{tpu_custom_call.1} parent=35 // pred_check_branch
        %304 = sbr.rel (%p302) target = $region40
      $region39: #{tpu_custom_call.1} parent=35 // pred_region
        %p305 = scmp.lt.s32.totalorder %s22, 1
        %s306 = scalar_select %p305, %s22, 1
        %s307 = smul.addr %s306, 2
        %s308 = smul.addr %s307, 8
        %s309 = scalar_lea.vmem %s0, %s308
      $region40: #{tpu_custom_call.1} parent=35 // pred_fallthru
        _
      // Predicated region
      $region41: #{tpu_custom_call.1} parent=35 // pred_check
        %p310 = pneg %p75
      $region42: #{tpu_custom_call.1} parent=35 // pred_check_branch
        %312 = sbr.rel (%p310) target = $region44
      $region43: #{tpu_custom_call.1} parent=35 // pred_region
        %p313 = scmp.lt.s32.totalorder %s22, 1
        %s314 = scalar_select %p313, %s22, 1
        %p315 = scmp.lt.s32.totalorder %s23, 0
        %s316 = scalar_select %p315, %s23, 0
        %s317 = sadd.s32 %s316, %s314
        %s318 = smul.addr %s317, 4
        %s319 = scalar_lea.vmem %s1, %s318
      $region44: #{tpu_custom_call.1} parent=35 // pred_fallthru
        _
      // Predicated region
      $region45: #{tpu_custom_call.1} parent=35 // pred_check
        %p320 = pneg %p101
      $region46: #{tpu_custom_call.1} parent=35 // pred_check_branch
        %322 = sbr.rel (%p320) target = $region48
      $region47: #{tpu_custom_call.1} parent=35 // pred_region
        %p323 = scmp.lt.s32.totalorder %s22, 1
        %s324 = scalar_select %p323, %s22, 1
        %s325 = smul.addr %s324, 4
        %s326 = scalar_lea.vmem %s2, %s325
      $region48: #{tpu_custom_call.1} parent=35 // pred_fallthru
        _
      // Predicated region
      $region49: #{tpu_custom_call.1} parent=35 // pred_check
        %p327 = pneg %p129
      $region50: #{tpu_custom_call.1} parent=35 // pred_check_branch
        %329 = sbr.rel (%p327) target = $region52
      $region51: #{tpu_custom_call.1} parent=35 // pred_region
        %p330 = scmp.lt.s32.totalorder %s22, 1
        %s331 = scalar_select %p330, %s22, 1
        %p332 = scmp.lt.s32.totalorder %s23, 0
        %s333 = scalar_select %p332, %s23, 0
        %s334 = sadd.s32 %s333, %s331
        %s335 = smul.addr %s334, 4
        %s336 = scalar_lea.vmem %s3, %s335
      $region52: #{tpu_custom_call.1} parent=35 // pred_fallthru
        _
    $region36: #{tpu_custom_call.1} parent=5 // pred_fallthru
      _
    %p337 = scmp.le.s32.totalorder 1, %s15
    %p338 = scmp.lt.s32.totalorder %s15, 3
    %p339 = pnand %p337, %p338
    %p340 = pneg %p339
    // Predicated region
    $region53: #{tpu_custom_call.1} parent=5 // pred_check
      _
    $region54: #{tpu_custom_call.1} parent=5 // pred_check_branch
      %342 = sbr.rel (%p339) target = $region56
    $region55: #{tpu_custom_call.1} parent=5 // pred_region
      %s343 = ssub.s32 %s15, 1
      %p344 = scmp.lt.s32.totalorder %s24, 1
      %s345 = scalar_select %p344, %s24, 1
      %s346 = smul.addr %s345, 2
      %s347 = smul.addr %s346, 8
      %s348 = scalar_lea.vmem %s0, %s347
      %p349 = pneg %p53
      %p350 = pneg %p50
      %p351 = scmp.lt.s32.totalorder %s24, 1
      %s352 = scalar_select %p351, %s24, 1
      %p353 = scmp.lt.s32.totalorder %s25, 0
      %s354 = scalar_select %p353, %s25, 0
      %s355 = sadd.s32 %s354, %s352
      %s356 = smul.addr %s355, 4
      %s357 = scalar_lea.vmem %s1, %s356
      %p358 = pneg %p81
      %p359 = pneg %p78
      %p360 = scmp.lt.s32.totalorder %s24, 1
      %s361 = scalar_select %p360, %s24, 1
      %s362 = smul.addr %s361, 4
      %s363 = scalar_lea.vmem %s2, %s362
      %p364 = pneg %p107
      %p365 = pneg %p104
      %p366 = scmp.lt.s32.totalorder %s24, 1
      %s367 = scalar_select %p366, %s24, 1
      %p368 = scmp.lt.s32.totalorder %s25, 0
      %s369 = scalar_select %p368, %s25, 0
      %s370 = sadd.s32 %s369, %s367
      %s371 = smul.addr %s370, 4
      %s372 = scalar_lea.vmem %s3, %s371
      %p373 = pneg %p135
      %p374 = pneg %p132
      %p375 = pneg %p156
      %p376 = pneg %p153
      %p377 = pneg %p177
      %p378 = pneg %p174
      %p379 = pneg %p198
      %p380 = pneg %p195
      %p381 = pneg %p219
      %p382 = pneg %p216
      %p383 = pneg %p240
      %p384 = pneg %p237
      %p385 = pneg %p268
      %p386 = pneg %p265
      %p387 = scmp.lt.s32.totalorder %s24, 1
      %s388 = scalar_select %p387, %s24, 1
      %p389 = scmp.lt.s32.totalorder %s25, 0
      %s390 = scalar_select %p389, %s25, 0
      %s391 = smul.addr %s388, 2
      %s392 = sadd.s32 %s390, %s391
      %s393 = smul.addr %s392, 8
      %s394 = scalar_lea.vmem %s9, %s393
      %p395 = scmp.lt.s32.totalorder %s24, 1
      %s396 = scalar_select %p395, %s24, 1
      %s397 = smul.addr %s396, 2
      %s398 = smul.addr %s397, 8
      %s399 = scalar_lea.vmem %s0, %s398
      %p400 = scmp.lt.s32.totalorder %s24, 1
      %s401 = scalar_select %p400, %s24, 1
      %p402 = scmp.lt.s32.totalorder %s25, 0
      %s403 = scalar_select %p402, %s25, 0
      %s404 = sadd.s32 %s403, %s401
      %s405 = smul.addr %s404, 4
      %s406 = scalar_lea.vmem %s1, %s405
      %p407 = scmp.lt.s32.totalorder %s24, 1
      %s408 = scalar_select %p407, %s24, 1
      %s409 = smul.addr %s408, 4
      %s410 = scalar_lea.vmem %s2, %s409
      %p411 = scmp.lt.s32.totalorder %s24, 1
      %s412 = scalar_select %p411, %s24, 1
      %p413 = scmp.lt.s32.totalorder %s25, 0
      %s414 = scalar_select %p413, %s25, 0
      %s415 = sadd.s32 %s414, %s412
      %s416 = smul.addr %s415, 4
      %s417 = scalar_lea.vmem %s3, %s416
      %p418 = scmp.lt.s32.totalorder %s24, 1
      %s419 = scalar_select %p418, %s24, 1
      %p420 = scmp.lt.s32.totalorder %s25, 0
      %s421 = scalar_select %p420, %s25, 0
      %s422 = smul.addr %s419, 2
      %s423 = sadd.s32 %s421, %s422
      %s424 = smul.addr %s423, 8
      %s425 = scalar_lea.vmem %s9, %s424
      %v427 = vld [vmem:[%s399] sm:$0xff]
      %v428 = vld [vmem:[%s399 + $0x8] sm:$0xff]
      %v429 = vld [vmem:[%s406] sm:$0x7]
      %v430 = vld [vmem:[%s410] sm:$0xf]
      %v431 = vld [vmem:[%s417] sm:$0xf]
      %v432 = vmul.f32 %v427, %v427
      %v433 = vmul.f32 %v428, %v428
      %vm434 = vcmask 23552
      %v435 = vsel %vm434, %v432, 0.0
      %436 = vadd.xlane.f32.xlu0 %v435
      %v437 = vpop.xlane.xlu0 %436
      %v438 = vsel %vm434, %v433, 0.0
      %439 = vadd.xlane.f32.xlu0 %v438
      %v440 = vpop.xlane.xlu0 %439
      %v441 = vmul.f32 %v429, %v429
      %vm442 = vcmask 59392
      %v443 = vsel %vm442, %v441, 0.0
      %v444 = vrot.slane %v443, 4
      %v445 = vadd.f32 %v443, %v444
      %v446 = vrot.slane %v445, 2
      %v447 = vadd.f32 %v445, %v446
      %v448 = vrot.slane %v447, 1
      %v449 = vadd.f32 %v447, %v448
      %v451 = vsel %vm434, %v427, 0
      %v454 = vsel %vm434, %v428, 0
      %vm456 = vcmask 1042432
      %v458 = vsel %vm456, %v429, 0
      %460 = vmatprep.subr.mxu0 0.0
      %461 = vmatpush1.msra.mxu0 0.0
      %462 = vmatprep.subr.mxu0 0.0
      %463 = vmatpush1.msra.mxu0 0.0
      %464 = vmatprep.subr.mxu0 0.0
      %465 = vmatpush1.msra.mxu0 0.0
      %466 = vmatprep.subr.mxu0 0.0
      %467 = vmatpush1.msra.mxu0 0.0
      %468 = vmatprep.subr.mxu0 0.0
      %469 = vmatpush1.msra.mxu0 0.0
      %470 = vmatprep.subr.mxu0 0.0
      %471 = vmatpush1.msra.mxu0 0.0
      %472 = vmatprep.subr.mxu0 0.0
      %473 = vmatpush1.msra.mxu0 0.0
      %474 = vmatprep.subr.mxu0 0.0
      %475 = vmatpush1.msra.mxu0 0.0
      %476 = vmatprep.subr.mxu0 0.0
      %477 = vmatpush1.msra.mxu0 0.0
      %478 = vmatprep.subr.mxu0 0.0
      %479 = vmatpush1.msra.mxu0 0.0
      %480 = vmatprep.subr.mxu0 0.0
      %481 = vmatpush1.msra.mxu0 0.0
      %482 = vmatprep.subr.mxu0 0.0
      %483 = vmatpush1.msra.mxu0 0.0
      %484 = vmatprep.subr.mxu0 0.0
      %485 = vmatpush1.msra.mxu0 0.0
      %486 = vmatprep.subr.mxu0 0.0
      %487 = vmatpush1.msra.mxu0 0.0
      %488 = vmatprep.subr.mxu0 0.0
      %489 = vmatpush1.msra.mxu0 0.0
      %490 = vmatprep.subr.mxu0 0.0
      %491 = vmatpush1.msra.mxu0 %v458
      %492 = vmatprep.subr.mxu0 0.0
      %493 = vmatpush2.msra.mxu0 0.0
      %494 = vmatprep.subr.mxu0 0.0
      %495 = vmatpush2.msra.mxu0 0.0
      %496 = vmatprep.subr.mxu0 0.0
      %497 = vmatpush2.msra.mxu0 0.0
      %498 = vmatprep.subr.mxu0 0.0
      %499 = vmatpush2.msra.mxu0 0.0
      %500 = vmatprep.subr.mxu0 0.0
      %501 = vmatpush2.msra.mxu0 0.0
      %502 = vmatprep.subr.mxu0 0.0
      %503 = vmatpush2.msra.mxu0 0.0
      %504 = vmatprep.subr.mxu0 0.0
      %505 = vmatpush2.msra.mxu0 0.0
      %506 = vmatprep.subr.mxu0 0.0
      %507 = vmatpush2.msra.mxu0 0.0
      %508 = vmatprep.subr.mxu0 0.0
      %509 = vmatpush2.msra.mxu0 0.0
      %510 = vmatprep.subr.mxu0 0.0
      %511 = vmatpush2.msra.mxu0 0.0
      %512 = vmatprep.subr.mxu0 0.0
      %513 = vmatpush2.msra.mxu0 0.0
      %514 = vmatprep.subr.mxu0 0.0
      %515 = vmatpush2.msra.mxu0 0.0
      %516 = vmatprep.subr.mxu0 0.0
      %517 = vmatpush2.msra.mxu0 0.0
      %518 = vmatprep.subr.mxu0 0.0
      %519 = vmatpush2.msra.mxu0 0.0
      %520 = vmatprep.subr.mxu0 0.0
      %521 = vmatpush2.msra.mxu0 0.0
      %522 = vmatprep.subr.mxu0 0.0
      %523 = vmatpush2.msra.mxu0 0.0
      %524 = vmatprep.mubr.f32.mxu0 0.0
      %525 = vmatmul.mubr.f32.gmra.mxu0 %v451
      %v526 = vpop.f32.mrf.mxu0
      %v527 = vadd.f32 0.0, %v526
      %v528 = vpop.f32.mrf.mxu0
      %529 = vmatprep.mubr.f32.mxu0 0.0
      %530 = vmatmul.mubr.f32.gmra.mxu0 %v454
      %v531 = vpop.f32.mrf.mxu0
      %v532 = vadd.f32 0.0, %v531
      %v533 = vpop.f32.mrf.mxu0
      %534 = vdwg.mxu0
      %v535 = vadd.f32 %v437, %v449
      %v536 = vadd.f32 %v440, %v449
      %v537 = vmul.f32 %v527, 2.0
      %v538 = vmul.f32 %v532, 2.0
      %v539 = vsub.f32 %v535, %v537
      %v540 = vsub.f32 %v536, %v538
      %v541 = vlaneseq
      %v542 = vshrl.u32 %v541, 7
      %v543 = vadd.s32 %v542, 8
      %vm544 = vcmask 64512
      %v545 = vsel %vm544, %v539, inf
      %v546 = vsel %vm544, %v540, inf
      %v547 = vmin.f32 %v545, %v546
      %v548 = vrot.slane %v547, 4
      %v549 = vmin.f32 %v547, %v548
      %v550 = vrot.slane %v549, 2
      %v551 = vmin.f32 %v549, %v550
      %v552 = vrot.slane %v551, 1
      %v553 = vmin.f32 %v551, %v552
      %vm554 = vcmp.le.f32.partialorder %v539, %v553
      %vm555 = vcmp.le.f32.partialorder %v540, %v553
      %v556 = vsel %vm554, %v542, 16
      %v557 = vsel %vm555, %v543, 16
      %v558 = vsel %vm544, %v556, 2147483647
      %v559 = vsel %vm544, %v557, 2147483647
      %vm560 = vcmp.lt.s32.totalorder %v558, %v559
      %v561 = vsel %vm560, %v558, %v559
      %v562 = vrot.slane %v561, 4
      %vm563 = vcmp.lt.s32.totalorder %v561, %v562
      %v564 = vsel %vm563, %v561, %v562
      %v565 = vrot.slane %v564, 2
      %vm566 = vcmp.lt.s32.totalorder %v564, %v565
      %v567 = vsel %vm566, %v564, %v565
      %v568 = vrot.slane %v567, 1
      %vm569 = vcmp.lt.s32.totalorder %v567, %v568
      %v570 = vsel %vm569, %v567, %v568
      %vm571 = vcmp.eq.s32.totalorder %v542, %v570
      %vm572 = vcmp.eq.s32.totalorder %v543, %v570
      %v573 = vmax.f32 %v553, 1e-10
      %v574 = vrcp.pop %v573
      %v575 = vsel %vm571, 1, 0
      %v576 = vsel %vm572, 1, 0
      %v577 = vcvt.s32.f32 %v575
      %v578 = vcvt.s32.f32 %v576
      %v579 = vmul.f32 %v577, %v574
      %v580 = vmul.f32 %v578, %v574
      %v581 = vadd.f32 %v579, 0.0
      %v582 = vadd.f32 %v580, 0.0
      %v583 = vsel %vm571, inf, %v539
      %v584 = vsel %vm572, inf, %v540
      %v585 = vsel %vm544, %v583, inf
      %v586 = vsel %vm544, %v584, inf
      %v587 = vmin.f32 %v585, %v586
      %v588 = vrot.slane %v587, 4
      %v589 = vmin.f32 %v587, %v588
      %v590 = vrot.slane %v589, 2
      %v591 = vmin.f32 %v589, %v590
      %v592 = vrot.slane %v591, 1
      %v593 = vmin.f32 %v591, %v592
      %vm594 = vcmp.le.f32.partialorder %v583, %v593
      %vm595 = vcmp.le.f32.partialorder %v584, %v593
      %v596 = vsel %vm594, %v542, 16
      %v597 = vsel %vm595, %v543, 16
      %v598 = vsel %vm544, %v596, 2147483647
      %v599 = vsel %vm544, %v597, 2147483647
      %vm600 = vcmp.lt.s32.totalorder %v598, %v599
      %v601 = vsel %vm600, %v598, %v599
      %v602 = vrot.slane %v601, 4
      %vm603 = vcmp.lt.s32.totalorder %v601, %v602
      %v604 = vsel %vm603, %v601, %v602
      %v605 = vrot.slane %v604, 2
      %vm606 = vcmp.lt.s32.totalorder %v604, %v605
      %v607 = vsel %vm606, %v604, %v605
      %v608 = vrot.slane %v607, 1
      %vm609 = vcmp.lt.s32.totalorder %v607, %v608
      %v610 = vsel %vm609, %v607, %v608
      %vm611 = vcmp.eq.s32.totalorder %v542, %v610
      %vm612 = vcmp.eq.s32.totalorder %v543, %v610
      %v613 = vmax.f32 %v593, 1e-10
      %v614 = vrcp.pop %v613
      %v615 = vsel %vm611, 1, 0
      %v616 = vsel %vm612, 1, 0
      %v617 = vcvt.s32.f32 %v615
      %v618 = vcvt.s32.f32 %v616
      %v619 = vmul.f32 %v617, %v614
      %v620 = vmul.f32 %v618, %v614
      %v621 = vadd.f32 %v581, %v619
      %v622 = vadd.f32 %v582, %v620
      %v623 = vsel %vm611, inf, %v583
      %v624 = vsel %vm612, inf, %v584
      %v625 = vsel %vm544, %v623, inf
      %v626 = vsel %vm544, %v624, inf
      %v627 = vmin.f32 %v625, %v626
      %v628 = vrot.slane %v627, 4
      %v629 = vmin.f32 %v627, %v628
      %v630 = vrot.slane %v629, 2
      %v631 = vmin.f32 %v629, %v630
      %v632 = vrot.slane %v631, 1
      %v633 = vmin.f32 %v631, %v632
      %vm634 = vcmp.le.f32.partialorder %v623, %v633
      %vm635 = vcmp.le.f32.partialorder %v624, %v633
      %v636 = vsel %vm634, %v542, 16
      %v637 = vsel %vm635, %v543, 16
      %v638 = vsel %vm544, %v636, 2147483647
      %v639 = vsel %vm544, %v637, 2147483647
      %vm640 = vcmp.lt.s32.totalorder %v638, %v639
      %v641 = vsel %vm640, %v638, %v639
      %v642 = vrot.slane %v641, 4
      %vm643 = vcmp.lt.s32.totalorder %v641, %v642
      %v644 = vsel %vm643, %v641, %v642
      %v645 = vrot.slane %v644, 2
      %vm646 = vcmp.lt.s32.totalorder %v644, %v645
      %v647 = vsel %vm646, %v644, %v645
      %v648 = vrot.slane %v647, 1
      %vm649 = vcmp.lt.s32.totalorder %v647, %v648
      %v650 = vsel %vm649, %v647, %v648
      %vm651 = vcmp.eq.s32.totalorder %v542, %v650
      %vm652 = vcmp.eq.s32.totalorder %v543, %v650
      %v653 = vmax.f32 %v633, 1e-10
      %v654 = vrcp.pop %v653
      %v655 = vsel %vm651, 1, 0
      %v656 = vsel %vm652, 1, 0
      %v657 = vcvt.s32.f32 %v655
      %v658 = vcvt.s32.f32 %v656
      %v659 = vmul.f32 %v657, %v654
      %v660 = vmul.f32 %v658, %v654
      %v661 = vadd.f32 %v621, %v659
      %v662 = vadd.f32 %v622, %v660
      %v663 = vsel %vm544, %v661, 0.0
      %v664 = vsel %vm544, %v662, 0.0
      %v665 = vadd.f32 %v663, %v664
      %v666 = vrot.slane %v665, 4
      %v667 = vadd.f32 %v665, %v666
      %v668 = vrot.slane %v667, 2
      %v669 = vadd.f32 %v667, %v668
      %v670 = vrot.slane %v669, 1
      %v671 = vadd.f32 %v669, %v670
      %v672 = vrcp.pop %v671
      %v673 = vmul.f32 %v661, %v672
      %v674 = vmul.f32 %v662, %v672
      %v675 = vpack.c.bf16 %v430, %v430
      %v676 = vpack.c.bf16 %v674, %v673
      %vm677 = vcmask 130048
      %v679 = vsel %vm677, %v675, 0
      %681 = vmatprep.subr.bf16.mxu0 0
      %682 = vmatpush1.bf16.msra.mxu0 0
      %683 = vmatprep.subr.bf16.mxu0 0
      %684 = vmatpush1.bf16.msra.mxu0 0
      %685 = vmatprep.subr.bf16.mxu0 0
      %686 = vmatpush1.bf16.msra.mxu0 0
      %687 = vmatprep.subr.bf16.mxu0 0
      %688 = vmatpush1.bf16.msra.mxu0 0
      %689 = vmatprep.subr.bf16.mxu0 0
      %690 = vmatpush1.bf16.msra.mxu0 0
      %691 = vmatprep.subr.bf16.mxu0 0
      %692 = vmatpush1.bf16.msra.mxu0 0
      %693 = vmatprep.subr.bf16.mxu0 0
      %694 = vmatpush1.bf16.msra.mxu0 0
      %695 = vmatprep.subr.bf16.mxu0 0
      %696 = vmatpush1.bf16.msra.mxu0 %v676
      %697 = vmatprep.subr.bf16.mxu0 0
      %698 = vmatpush2.bf16.msra.mxu0 0
      %699 = vmatprep.subr.bf16.mxu0 0
      %700 = vmatpush2.bf16.msra.mxu0 0
      %701 = vmatprep.subr.bf16.mxu0 0
      %702 = vmatpush2.bf16.msra.mxu0 0
      %703 = vmatprep.subr.bf16.mxu0 0
      %704 = vmatpush2.bf16.msra.mxu0 0
      %705 = vmatprep.subr.bf16.mxu0 0
      %706 = vmatpush2.bf16.msra.mxu0 0
      %707 = vmatprep.subr.bf16.mxu0 0
      %708 = vmatpush2.bf16.msra.mxu0 0
      %709 = vmatprep.subr.bf16.mxu0 0
      %710 = vmatpush2.bf16.msra.mxu0 0
      %711 = vmatprep.subr.bf16.mxu0 0
      %712 = vmatpush2.bf16.msra.mxu0 0
      %713 = vmatprep.mubr.bf16.mxu0 0
      %714 = vmatmul.mubr.bf16.gmra.mxu0 %v679
      %v715 = vpop.f32.mrf.mxu0
      %v716 = vadd.f32 0.0, %v715
      %v717 = vpop.f32.mrf.mxu0
      %v718 = vpop.f32.mrf.mxu0
      %v719 = vpop.f32.mrf.mxu0
      %720 = vdwg.mxu0
      %v721 = vld [vmem:[%s4] sm:$0xf]
      %v722 = vld [vmem:[%s4 + $0x4] sm:$0xf]
      %v723 = vld [vmem:[%s4 + $0x8] sm:$0xf]
      %v724 = vld [vmem:[%s4 + $0xc] sm:$0xf]
      %v725 = vld [vmem:[%s5] sm:$0xf]
      %v726 = vld [vmem:[%s5 + $0x4] sm:$0xf]
      %v727 = vld [vmem:[%s5 + $0x8] sm:$0xf]
      %v728 = vld [vmem:[%s5 + $0xc] sm:$0xf]
      %v729 = vld [vmem:[%s6] sm:$0xff]
      %v730 = vld [vmem:[%s6 + $0x8] sm:$0xff]
      %v731 = vld [vmem:[%s6 + $0x10] sm:$0xff]
      %v732 = vld [vmem:[%s6 + $0x18] sm:$0xff]
      %v733 = vpack.c.bf16 %v716, %v716
      %v734 = vpack.c.bf16 %v431, %v431
      %v739 = vunpack.c.l.b16 %v725
      %v740 = vunpack.c.l.b16 %v726
      %v741 = vunpack.c.l.b16 %v727
      %v742 = vunpack.c.l.b16 %v728
      %v743 = vpack.c.b16 %v740, %v739
      %v744 = vpack.c.b16 %v742, %v741
      %vm745 = vcmask 31744
      %v747 = vsel %vm745, %v743, 0
      %v750 = vsel %vm745, %v744, 0
      %vm752 = vcmask 1041408
      %v754 = vsel %vm752, %v734, 0
      %756 = vmatprep.subr.bf16.mxu0 0
      %757 = vmatpush1.bf16.msra.mxu0 0
      %758 = vmatprep.subr.bf16.mxu0 0
      %759 = vmatpush1.bf16.msra.mxu0 0
      %760 = vmatprep.subr.bf16.mxu0 0
      %761 = vmatpush1.bf16.msra.mxu0 0
      %762 = vmatprep.subr.bf16.mxu0 0
      %763 = vmatpush1.bf16.msra.mxu0 0
      %764 = vmatprep.subr.bf16.mxu0 0
      %765 = vmatpush1.bf16.msra.mxu0 0
      %766 = vmatprep.subr.bf16.mxu0 0
      %767 = vmatpush1.bf16.msra.mxu0 0
      %768 = vmatprep.subr.bf16.mxu0 0
      %769 = vmatpush1.bf16.msra.mxu0 0
      %770 = vmatprep.subr.bf16.mxu0 0
      %771 = vmatpush1.bf16.msra.mxu0 %v754
      %772 = vmatprep.subr.bf16.mxu0 0
      %773 = vmatpush2.bf16.msra.mxu0 0
      %774 = vmatprep.subr.bf16.mxu0 0
      %775 = vmatpush2.bf16.msra.mxu0 0
      %776 = vmatprep.subr.bf16.mxu0 0
      %777 = vmatpush2.bf16.msra.mxu0 0
      %778 = vmatprep.subr.bf16.mxu0 0
      %779 = vmatpush2.bf16.msra.mxu0 0
      %780 = vmatprep.subr.bf16.mxu0 0
      %781 = vmatpush2.bf16.msra.mxu0 0
      %782 = vmatprep.subr.bf16.mxu0 0
      %783 = vmatpush2.bf16.msra.mxu0 0
      %784 = vmatprep.subr.bf16.mxu0 0
      %785 = vmatpush2.bf16.msra.mxu0 0
      %786 = vmatprep.subr.bf16.mxu0 0
      %787 = vmatpush2.bf16.msra.mxu0 0
      %788 = vmatprep.mubr.bf16.mxu0 0
      %789 = vmatmul.mubr.bf16.gmra.mxu0 %v747
      %v790 = vpop.f32.mrf.mxu0
      %v791 = vadd.f32 0.0, %v790
      %v792 = vpop.f32.mrf.mxu0
      %v793 = vpop.f32.mrf.mxu0
      %v794 = vadd.f32 0.0, %v793
      %v795 = vpop.f32.mrf.mxu0
      %796 = vmatprep.mubr.bf16.mxu0 0
      %797 = vmatmul.mubr.bf16.gmra.mxu0 %v750
      %v798 = vpop.f32.mrf.mxu0
      %v799 = vadd.f32 0.0, %v798
      %v800 = vpop.f32.mrf.mxu0
      %v801 = vpop.f32.mrf.mxu0
      %v802 = vadd.f32 0.0, %v801
      %v803 = vpop.f32.mrf.mxu0
      %804 = vdwg.mxu0
      %v809 = vunpack.c.l.b16 %v721
      %v810 = vunpack.c.l.b16 %v722
      %v811 = vunpack.c.l.b16 %v723
      %v812 = vunpack.c.l.b16 %v724
      %v813 = vpack.c.b16 %v810, %v809
      %v814 = vpack.c.b16 %v812, %v811
      %v816 = vsel %vm745, %v813, 0
      %v819 = vsel %vm745, %v814, 0
      %v822 = vsel %vm752, %v733, 0
      %824 = vmatprep.subr.bf16.mxu0 0
      %825 = vmatpush1.bf16.msra.mxu0 0
      %826 = vmatprep.subr.bf16.mxu0 0
      %827 = vmatpush1.bf16.msra.mxu0 0
      %828 = vmatprep.subr.bf16.mxu0 0
      %829 = vmatpush1.bf16.msra.mxu0 0
      %830 = vmatprep.subr.bf16.mxu0 0
      %831 = vmatpush1.bf16.msra.mxu0 0
      %832 = vmatprep.subr.bf16.mxu0 0
      %833 = vmatpush1.bf16.msra.mxu0 0
      %834 = vmatprep.subr.bf16.mxu0 0
      %835 = vmatpush1.bf16.msra.mxu0 0
      %836 = vmatprep.subr.bf16.mxu0 0
      %837 = vmatpush1.bf16.msra.mxu0 0
      %838 = vmatprep.subr.bf16.mxu0 0
      %839 = vmatpush1.bf16.msra.mxu0 %v822
      %840 = vmatprep.subr.bf16.mxu0 0
      %841 = vmatpush2.bf16.msra.mxu0 0
      %842 = vmatprep.subr.bf16.mxu0 0
      %843 = vmatpush2.bf16.msra.mxu0 0
      %844 = vmatprep.subr.bf16.mxu0 0
      %845 = vmatpush2.bf16.msra.mxu0 0
      %846 = vmatprep.subr.bf16.mxu0 0
      %847 = vmatpush2.bf16.msra.mxu0 0
      %848 = vmatprep.subr.bf16.mxu0 0
      %849 = vmatpush2.bf16.msra.mxu0 0
      %850 = vmatprep.subr.bf16.mxu0 0
      %851 = vmatpush2.bf16.msra.mxu0 0
      %852 = vmatprep.subr.bf16.mxu0 0
      %853 = vmatpush2.bf16.msra.mxu0 0
      %854 = vmatprep.subr.bf16.mxu0 0
      %855 = vmatpush2.bf16.msra.mxu0 0
      %856 = vmatprep.mubr.bf16.mxu0 0
      %857 = vmatmul.mubr.bf16.gmra.mxu0 %v816
      %v858 = vpop.f32.mrf.mxu0
      %v859 = vadd.f32 %v791, %v858
      %v860 = vpop.f32.mrf.mxu0
      %v861 = vpop.f32.mrf.mxu0
      %v862 = vadd.f32 %v794, %v861
      %v863 = vpop.f32.mrf.mxu0
      %864 = vmatprep.mubr.bf16.mxu0 0
      %865 = vmatmul.mubr.bf16.gmra.mxu0 %v819
      %v866 = vpop.f32.mrf.mxu0
      %v867 = vadd.f32 %v799, %v866
      %v868 = vpop.f32.mrf.mxu0
      %v869 = vpop.f32.mrf.mxu0
      %v870 = vadd.f32 %v802, %v869
      %v871 = vpop.f32.mrf.mxu0
      %872 = vdwg.mxu0
      %874 = vset.pattern.permute.xlu0 0
      %875 = vperm.xlu0 %874, %v729
      %v876 = vpop.permute.xlu0 %875
      %879 = vset.pattern.permute.xlu0 0
      %880 = vperm.xlu0 %879, %v730
      %v881 = vpop.permute.xlu0 %880
      %884 = vset.pattern.permute.xlu0 0
      %885 = vperm.xlu0 %884, %v731
      %v886 = vpop.permute.xlu0 %885
      %889 = vset.pattern.permute.xlu0 0
      %890 = vperm.xlu0 %889, %v732
      %v891 = vpop.permute.xlu0 %890
      %v893 = vadd.f32 %v859, %v876
      %v894 = vadd.f32 %v862, %v881
      %v895 = vadd.f32 %v867, %v886
      %v896 = vadd.f32 %v870, %v891
      %v897 = vmax.f32 %v893, 0.0
      %v898 = vmax.f32 %v894, 0.0
      %v899 = vmax.f32 %v895, 0.0
      %v900 = vmax.f32 %v896, 0.0
      %v901 = vld [vmem:[%s7] sm:$0xf]
      %v902 = vld [vmem:[%s7 + $0x4] sm:$0xf]
      %v903 = vld [vmem:[%s8] sm:$0xff]
      %v904 = vld [vmem:[%s8 + $0x8] sm:$0xff]
      %v905 = vpack.c.bf16 %v898, %v897
      %v906 = vpack.c.bf16 %v900, %v899
      %908 = vset.pattern.permute.xlu0 0
      %909 = vperm.xlu0 %908, %v903
      %v910 = vpop.permute.xlu0 %909
      %913 = vset.pattern.permute.xlu0 0
      %914 = vperm.xlu0 %913, %v904
      %v915 = vpop.permute.xlu0 %914
      %v919 = vunpack.c.l.b16 %v901
      %v920 = vunpack.c.l.b16 %v902
      %v921 = vpack.c.b16 %v920, %v919
      %vm922 = vcmask 261120
      %v924 = vsel %vm922, %v921, 0
      %926 = vmatprep.subr.bf16.mxu0 0
      %927 = vmatpush1.bf16.msra.mxu0 0
      %928 = vmatprep.subr.bf16.mxu0 0
      %929 = vmatpush1.bf16.msra.mxu0 0
      %930 = vmatprep.subr.bf16.mxu0 0
      %931 = vmatpush1.bf16.msra.mxu0 0
      %932 = vmatprep.subr.bf16.mxu0 0
      %933 = vmatpush1.bf16.msra.mxu0 0
      %934 = vmatprep.subr.bf16.mxu0 0
      %935 = vmatpush1.bf16.msra.mxu0 0
      %936 = vmatprep.subr.bf16.mxu0 0
      %937 = vmatpush1.bf16.msra.mxu0 0
      %938 = vmatprep.subr.bf16.mxu0 0
      %939 = vmatpush1.bf16.msra.mxu0 %v906
      %940 = vmatprep.subr.bf16.mxu0 0
      %941 = vmatpush1.bf16.msra.mxu0 %v905
      %942 = vmatprep.subr.bf16.mxu0 0
      %943 = vmatpush2.bf16.msra.mxu0 0
      %944 = vmatprep.subr.bf16.mxu0 0
      %945 = vmatpush2.bf16.msra.mxu0 0
      %946 = vmatprep.subr.bf16.mxu0 0
      %947 = vmatpush2.bf16.msra.mxu0 0
      %948 = vmatprep.subr.bf16.mxu0 0
      %949 = vmatpush2.bf16.msra.mxu0 0
      %950 = vmatprep.subr.bf16.mxu0 0
      %951 = vmatpush2.bf16.msra.mxu0 0
      %952 = vmatprep.subr.bf16.mxu0 0
      %953 = vmatpush2.bf16.msra.mxu0 0
      %954 = vmatprep.subr.bf16.mxu0 0
      %955 = vmatpush2.bf16.msra.mxu0 0
      %956 = vmatprep.subr.bf16.mxu0 0
      %957 = vmatpush2.bf16.msra.mxu0 0
      %958 = vmatprep.mubr.bf16.mxu0 0
      %959 = vmatmul.mubr.bf16.gmra.mxu0 %v924
      %v960 = vpop.f32.mrf.mxu0
      %v961 = vadd.f32 %v910, %v960
      %v962 = vpop.f32.mrf.mxu0
      %v963 = vpop.f32.mrf.mxu0
      %v964 = vadd.f32 %v915, %v963
      %v965 = vpop.f32.mrf.mxu0
      %966 = vdwg.mxu0
      %v967 = vmax.f32 %v961, 0.0
      %v968 = vmax.f32 %v964, 0.0
      %969 = vst.msk [vmem:[%s425] sm:$0xff] %vm544, %v967
      %970 = vst.msk [vmem:[%s425 + $0x8] sm:$0xff] %vm544, %v968
      %p971 = scmp.lt.s32.totalorder %s24, 1
      %s972 = scalar_select %p971, %s24, 1
      %p973 = scmp.lt.s32.totalorder %s25, 0
      %s974 = scalar_select %p973, %s25, 0
      %s975 = smul.addr %s972, 2
      %s976 = sadd.s32 %s974, %s975
      %s977 = smul.addr %s976, 8
      %s978 = scalar_lea.vmem %s9, %s977
      // Predicated region
      $region57: #{tpu_custom_call.1} parent=55 // pred_check
        %p979 = pneg %p265
      $region58: #{tpu_custom_call.1} parent=55 // pred_check_branch
        %981 = sbr.rel (%p979) target = $region60
      $region59: #{tpu_custom_call.1} parent=55 // pred_region
        _
      $region60: #{tpu_custom_call.1} parent=55 // pred_fallthru
        _
    $region56: #{tpu_custom_call.1} parent=5 // pred_fallthru
      _
    %p982 = scmp.le.s32.totalorder 2, %s15
    // Predicated region
    $region61: #{tpu_custom_call.1} parent=5 // pred_check
      %p983 = pneg %p982
    $region62: #{tpu_custom_call.1} parent=5 // pred_check_branch
      %985 = sbr.rel (%p983) target = $region64
    $region63: #{tpu_custom_call.1} parent=5 // pred_region
      %s986 = ssub.s32 %s15, 2
      // Predicated region
      $region65: #{tpu_custom_call.1} parent=63 // pred_check
        %p987 = pneg %p271
      $region66: #{tpu_custom_call.1} parent=63 // pred_check_branch
        %989 = sbr.rel (%p987) target = $region68
      $region67: #{tpu_custom_call.1} parent=63 // pred_region
        %p990 = scmp.lt.s32.totalorder %s26, 1
        %s991 = scalar_select %p990, %s26, 1
        %p992 = scmp.lt.s32.totalorder %s27, 0
        %s993 = scalar_select %p992, %s27, 0
        %s994 = smul.addr %s991, 2
        %s995 = sadd.s32 %s993, %s994
        %s996 = smul.addr %s995, 8
        %s997 = scalar_lea.vmem %s9, %s996
      $region68: #{tpu_custom_call.1} parent=63 // pred_fallthru
        _
    $region64: #{tpu_custom_call.1} parent=5 // pred_fallthru
      _
  $region6: #{tpu_custom_call.1} parent=0 // loop_footer
    %s19 = sadd.s32 1, %s15
  $region7: #{tpu_custom_call.1} parent=0 // loop_footer_branch
    %14 = sbr.rel target = $region3
  $region8: #{tpu_custom_call.1} parent=0 // loop_exit
    _

</llo_original>
